<compile_context>
chip_gen: v7x
topology: tpu7x:2x2x1
jax: 0.10.0
libtpu: 0.0.40
codegen_flags: <defaults>
</compile_context>

<pallas_src>
import math

import jax
import jax.numpy as jnp
from jax.experimental import pallas as pl
from jax.experimental.pallas import tpu as pltpu


def _round_up(v, m):
    return ((v + m - 1) // m) * m


# ----------------------------- Pallas kernel ------------------------------- #
def _embed_kernel(x_ref, w_ref, pe_ref, o_ref):
    # x_ref : (rows_blk, Kp)  flat rows [x[t-1] | x[t] | x[t+1] | marks | pad]
    # w_ref : (Kp, D)         fused [conv_prev | conv_mid | conv_next | temporal]
    # pe_ref: (rows_blk, D)   positional embedding tiled per batch-tile (f32)
    # o_ref : (rows_blk, D)   output rows (out dtype)
    y = jnp.dot(x_ref[...], w_ref[...], preferred_element_type=jnp.float32)
    o_ref[...] = (y + pe_ref[...]).astype(o_ref.dtype)


def _fused_embed(x_flat, w, pe_tile, out_dtype, *, rows_blk):
    rows, kp = x_flat.shape
    d = w.shape[-1]
    n_blocks = rows // rows_blk
    return pl.pallas_call(
        _embed_kernel,
        out_shape=jax.ShapeDtypeStruct((rows, d), out_dtype),
        grid=(n_blocks,),
        in_specs=[
            pl.BlockSpec((rows_blk, kp), lambda i: (i, 0)),
            pl.BlockSpec((kp, d), lambda i: (0, 0)),         # resident weights
            pl.BlockSpec((rows_blk, d), lambda i: (0, 0)),   # resident PE tile
        ],
        out_specs=pl.BlockSpec((rows_blk, d), lambda i: (i, 0)),
        compiler_params=pltpu.CompilerParams(
            dimension_semantics=("parallel",),
            vmem_limit_bytes=32 * 1024 * 1024,
        ),
    )(x_flat, w, pe_tile)


def _choose_batch_tile(batch, seq_len, target_rows=2048):
    """Pick Bt so Bt*seq_len is 16-row aligned (bf16-safe sublane tiling),
    close to ~2048 rows, and never larger than the (padded) batch.  We do NOT
    shrink tiles just to expose multiple grid steps: on v5e/v6e there is one
    TensorCore, and on v7x the two TCs share HBM bandwidth, so splitting this
    bandwidth-bound kernel into small steps only adds per-step overhead."""
    step = 16 // math.gcd(seq_len, 16)       # smallest bt: bt*seq_len % 16 == 0
    bt = max(1, target_rows // max(seq_len, 1))
    bt = _round_up(bt, step)
    bt = min(bt, _round_up(batch, step))
    return max(bt, step)


# ------------------------- parameter construction -------------------------- #
def init_params(key, c_in, d_model, freq="h", is_decoder=False):
    freq_map = {"h": 4, "t": 5, "s": 6, "m": 1, "a": 1, "w": 2, "d": 3, "b": 3}
    d_inp = freq_map[freq]
    if is_decoder:
        c_in += 1
    k_conv, k_lin = jax.random.split(key)

    # TokenEmbedding conv weight: (d_model, c_in, 3), kaiming_normal fan_in, leaky_relu
    fan_in = c_in * 3
    gain = math.sqrt(2.0 / (1.0 + 0.01 ** 2))
    std = gain / math.sqrt(fan_in)
    conv_w = std * jax.random.normal(k_conv, (d_model, c_in, 3), jnp.float32)

    # TimeFeatureEmbedding linear weight: (d_model, d_inp + 1), no bias.
    bound = 1.0 / math.sqrt(d_inp + 1)
    temporal_w = jax.random.uniform(
        k_lin, (d_model, d_inp + 1), jnp.float32, -bound, bound)

    # PositionalEmbedding table: (max_len, d_model)
    max_len = 5000
    position = jnp.arange(max_len, dtype=jnp.float32)[:, None]
    div_term = jnp.exp(jnp.arange(0, d_model, 2, dtype=jnp.float32)
                       * -(math.log(10000.0) / d_model))
    pe = jnp.zeros((max_len, d_model), jnp.float32)
    pe = pe.at[:, 0::2].set(jnp.sin(position * div_term))
    pe = pe.at[:, 1::2].set(jnp.cos(position * div_term))

    return {"conv_w": conv_w, "temporal_w": temporal_w, "pe": pe,
            "d_inp": d_inp, "c_in": c_in, "d_model": d_model,
            "is_decoder": is_decoder}


# ------------------------------ forward glue -------------------------------- #
def data_embedding_scaleformer(params, x, x_mark, scale, first_scale, label_len,
                               compute_dtype=jnp.bfloat16, out_dtype=None):
    """x: (B, L, c_in_base) f32, x_mark: (B, L, d_inp) f32. out dtype defaults
    to compute_dtype (bf16) to halve the dominant output writeback bytes."""
    if out_dtype is None:
        out_dtype = compute_dtype
    is_decoder = params["is_decoder"]
    d_model = params["d_model"]
    B, L, _ = x.shape

    if is_decoder:
        fill_val = 0.5 if scale == first_scale else 1.0
        last_col = jnp.where(
            jnp.arange(L)[None, :, None] < (label_len // scale), 0.0, fill_val)
        last_col = jnp.broadcast_to(last_col.astype(x.dtype), (B, L, 1))
        x = jnp.concatenate([x, last_col], axis=-1)
    c_tot = x.shape[-1]

    temporal_w = params["temporal_w"]                       # (D, d_inp + 1)
    conv_w = params["conv_w"]                               # (D, c_tot, 3)

    # positional embedding slice; fold the temporal scale constant (rank-1) in.
    pe_slice = params["pe"][scale: L * scale + 1: scale]    # (Lp, D)
    pe_eff = pe_slice + (1.0 / scale - 0.5) * temporal_w[:, -1][None, :]

    n_mark = x_mark.shape[-1]
    # TODO(synk): the PyTorch general_embed exception-fallback (marks with the
    # wrong feature count) is not translated; we assume n_mark == d_inp.
    L_out = min(L, x_mark.shape[1], pe_slice.shape[0])

    # circular conv neighbours over the FULL length L, then truncate to L_out
    x_prev = jnp.roll(x, 1, axis=1)
    x_next = jnp.roll(x, -1, axis=1)

    K = 3 * c_tot + n_mark
    Kp = _round_up(K, 8)
    feats = jnp.concatenate(
        [x_prev[:, :L_out], x[:, :L_out], x_next[:, :L_out], x_mark[:, :L_out]],
        axis=-1)
    if Kp > K:
        feats = jnp.concatenate(
            [feats, jnp.zeros((B, L_out, Kp - K), feats.dtype)], axis=-1)

    # fused weight slab (Kp, D): [conv prev | conv mid | conv next | temporal]
    w = jnp.zeros((Kp, d_model), jnp.float32)
    w = w.at[0:c_tot].set(conv_w[:, :, 0].T)
    w = w.at[c_tot:2 * c_tot].set(conv_w[:, :, 1].T)
    w = w.at[2 * c_tot:3 * c_tot].set(conv_w[:, :, 2].T)
    w = w.at[3 * c_tot:3 * c_tot + n_mark].set(temporal_w[:, :n_mark].T)

    # batch-tile sizing + padding
    bt = _choose_batch_tile(B, L_out)
    B_pad = _round_up(B, bt)
    if B_pad > B:
        feats = jnp.concatenate(
            [feats, jnp.zeros((B_pad - B, L_out, Kp), feats.dtype)], axis=0)
    x_flat = feats.reshape(B_pad * L_out, Kp).astype(compute_dtype)

    # PE slab pre-tiled to one batch-tile of rows (resident, f32 add in-kernel)
    pe_tile = jnp.broadcast_to(
        pe_eff[:L_out][None], (bt, L_out, d_model)
    ).reshape(bt * L_out, d_model).astype(jnp.float32)

    out_flat = _fused_embed(x_flat, w.astype(compute_dtype), pe_tile, out_dtype,
                            rows_blk=bt * L_out)
    out = out_flat.reshape(B_pad, L_out, d_model)[:B]
    # dropout(p=0.1) at inference == identity
    # TODO(synk): for very long production L, additionally tile over L (rolls
    # already live in the wrapper so no halo is needed in-kernel).
    return out


# ----------------------------- pure-JAX reference --------------------------- #
def _reference(params, x, x_mark, scale, first_scale, label_len):
    hi = jax.lax.Precision.HIGHEST
    is_decoder = params["is_decoder"]
    B, L, _ = x.shape
    if is_decoder:
        fill_val = 0.5 if scale == first_scale else 1.0
        last_col = jnp.where(
            jnp.arange(L)[None, :, None] < (label_len // scale), 0.0, fill_val)
        last_col = jnp.broadcast_to(last_col.astype(x.dtype), (B, L, 1))
        x = jnp.concatenate([x, last_col], axis=-1)
    conv_w = params["conv_w"]
    x_prev = jnp.roll(x, 1, axis=1)
    x_next = jnp.roll(x, -1, axis=1)
    vembed = (jnp.einsum("blc,dc->bld", x_prev, conv_w[:, :, 0], precision=hi)
              + jnp.einsum("blc,dc->bld", x, conv_w[:, :, 1], precision=hi)
              + jnp.einsum("blc,dc->bld", x_next, conv_w[:, :, 2], precision=hi))
    pe_slice = params["pe"][scale: L * scale + 1: scale]
    const_col = jnp.full((B, x_mark.shape[1], 1), 1.0 / scale - 0.5, x.dtype)
    xm = jnp.concatenate([x_mark, const_col], axis=2)
    tembed = jnp.einsum("blk,dk->bld", xm, params["temporal_w"], precision=hi)
    min_len = min(vembed.shape[1], pe_slice.shape[0], tembed.shape[1])
    return (vembed[:, :min_len] + pe_slice[None, :min_len]
            + tembed[:, :min_len])


# ---------------------------------- main ------------------------------------ #
if __name__ == "__main__":
    key = jax.random.PRNGKey(0)
    k_param, k_param2, k_x, k_mark = jax.random.split(key, 4)

    B, L, C_IN, D_MODEL = 2, 16, 4, 128   # D=128 -> lane-dense output stores
    FREQ = "h"                            # d_inp = 4

    x = jax.random.normal(k_x, (B, L, C_IN), jnp.float32)
    x_mark = jax.random.normal(k_mark, (B, L, 4), jnp.float32)

    # case 1: encoder, scale=1, bf16 compute + bf16 output (recommended path)
    params = init_params(k_param, C_IN, D_MODEL, freq=FREQ, is_decoder=False)
    out = jax.block_until_ready(
        data_embedding_scaleformer(params, x, x_mark, 1, 1, 8,
                                   compute_dtype=jnp.bfloat16))
    ref = _reference(params, x, x_mark, 1, 1, 8)
    assert out.shape == ref.shape == (B, L, D_MODEL)
    assert jnp.allclose(out.astype(jnp.float32), ref, atol=5e-2, rtol=5e-2)

    # case 1b: same inputs, f32 compute + f32 output, tight tolerance
    out32 = jax.block_until_ready(
        data_embedding_scaleformer(params, x, x_mark, 1, 1, 8,
                                   compute_dtype=jnp.float32,
                                   out_dtype=jnp.float32))
    assert jnp.allclose(out32, ref, atol=1e-3, rtol=1e-3)

    # case 2: decoder path, scale=4 (different PE stride, appended flag column)
    params_d = init_params(k_param2, C_IN, D_MODEL, freq=FREQ, is_decoder=True)
    out_d = jax.block_until_ready(
        data_embedding_scaleformer(params_d, x, x_mark, 4, 1, 8,
                                   compute_dtype=jnp.float32,
                                   out_dtype=jnp.float32))
    ref_d = _reference(params_d, x, x_mark, 4, 1, 8)
    assert out_d.shape == ref_d.shape
    assert jnp.allclose(out_d, ref_d, atol=1e-3, rtol=1e-3)

    print("KERNEL_OK")
</pallas_src>

<mosaic_0001>
module attributes {stable_mosaic.version = 11 : i64} {
  func.func @_embed_kernel(%arg0: i32, %arg1: memref<32x16xbf16, #tpu.memory_space<vmem>>, %arg2: memref<16x128xbf16, #tpu.memory_space<vmem>>, %arg3: memref<32x128xf32, #tpu.memory_space<vmem>>, %arg4: memref<32x128xbf16, #tpu.memory_space<vmem>>) attributes {dimension_semantics = [#tpu.dimension_semantics<parallel>], iteration_bounds = array<i64: 1>, scalar_prefetch = 0 : i64, scratch_operands = 0 : i64, tpu.core_type = #tpu.core_type<tc>, window_params = [{transform_indices = @transform_0, window_bounds = array<i64: 32, 16>}, {pipeline_mode = #tpu.pipeline_mode<synchronous>, transform_indices = @transform_1, window_bounds = array<i64: 16, 128>}, {pipeline_mode = #tpu.pipeline_mode<synchronous>, transform_indices = @transform_2, window_bounds = array<i64: 32, 128>}, {transform_indices = @transform_3, window_bounds = array<i64: 32, 128>}]} {
    %c0 = arith.constant 0 : index
    %c0_0 = arith.constant 0 : index
    %0 = vector.load %arg1[%c0, %c0_0] : memref<32x16xbf16, #tpu.memory_space<vmem>>, vector<32x16xbf16>
    %c0_1 = arith.constant 0 : index
    %c0_2 = arith.constant 0 : index
    %1 = vector.load %arg2[%c0_1, %c0_2] : memref<16x128xbf16, #tpu.memory_space<vmem>>, vector<16x128xbf16>
    %cst = arith.constant dense<0.000000e+00> : vector<32x128xf32>
    %2 = tpu.matmul %0, %1, %cst {dimension_numbers = #tpu.dot_dimension_numbers<[1], [0], [0], [1], [0, 0, 1, 1], [], []>} : vector<32x16xbf16>, vector<16x128xbf16>, vector<32x128xf32> -> vector<32x128xf32>
    %c0_3 = arith.constant 0 : index
    %c0_4 = arith.constant 0 : index
    %3 = vector.load %arg3[%c0_3, %c0_4] : memref<32x128xf32, #tpu.memory_space<vmem>>, vector<32x128xf32>
    %4 = arith.addf %2, %3 : vector<32x128xf32>
    %5 = arith.truncf %4 : vector<32x128xf32> to vector<32x128xbf16>
    %c0_5 = arith.constant 0 : index
    %c0_6 = arith.constant 0 : index
    %6 = vector.load %arg4[%c0_5, %c0_6] : memref<32x128xbf16, #tpu.memory_space<vmem>>, vector<32x128xbf16>
    tpu.vector_store %arg4[%c0_5, %c0_6], %5 {strides = array<i32>} : memref<32x128xbf16, #tpu.memory_space<vmem>>, vector<32x128xbf16>,
    return
  }
  func.func @transform_0(%arg0: i32) -> (i32, i32) {
    %c0_i32 = arith.constant 0 : i32
    %c0_i32_0 = arith.constant 0 : i32
    return %arg0, %c0_i32 : i32, i32
  }
  func.func @transform_1(%arg0: i32) -> (i32, i32) {
    %c0_i32 = arith.constant 0 : i32
    %c0_i32_0 = arith.constant 0 : i32
    %c0_i32_1 = arith.constant 0 : i32
    return %c0_i32, %c0_i32_0 : i32, i32
  }
  func.func @transform_2(%arg0: i32) -> (i32, i32) {
    %c0_i32 = arith.constant 0 : i32
    %c0_i32_0 = arith.constant 0 : i32
    %c0_i32_1 = arith.constant 0 : i32
    return %c0_i32, %c0_i32_0 : i32, i32
  }
  func.func @transform_3(%arg0: i32) -> (i32, i32) {
    %c0_i32 = arith.constant 0 : i32
    %c0_i32_0 = arith.constant 0 : i32
    return %arg0, %c0_i32 : i32, i32
  }
}

</mosaic_0001>

<llo_original>
// kernel: tpu_custom_call.1
$region0: #{tpu_custom_call.1}
  #allocation0 [shape = 'u32[]', space=smem, size = 0x4, offset = 0x4, fixed_abs, tag = 'smem constant byte address 0x4 - core index']
  #allocation1 [shape = 'u32[144,128]{1,0:T(1,128)}', space=vmem, size = 0x12000, scoped, tag = 'internal scratch']
  %s0 = inlined_call_operand.vmem [shape: bf16[32,16], index: 0, kind: input, shape index: {}]
  %s1 = inlined_call_operand.vmem [shape: bf16[16,128], index: 1, kind: input, shape index: {}]
  %s2 = inlined_call_operand.hbm [shape: f32[32,128], index: 2, kind: input, shape index: {}]
  %s3 = inlined_call_operand.hbm [shape: bf16[32,128], index: 3, kind: output, shape index: {}]
  %s4 = sld [smem:[#allocation0]]
  $region26: #{tpu_custom_call.1} parent=0
    _
  %s6 = ssub.s32 1, %s4
  %s7 = scalar_select 0, %s6, %s4
  $region1: #{tpu_custom_call.1} parent=0
    #allocation2 [shape = 'u8[16384]{0}', space=vmem, size = 0x4000, scoped, tag = 'input window, operand 2, single buffered']
    #allocation3 [shape = 's32[1]{0}', space=sflag, size = 0x4, scoped, tag = 'scoped memory for tpu_custom_call.1']
    #allocation4 [shape = 's32[1]{0}', space=sflag, size = 0x4, scoped, tag = 'scoped memory for tpu_custom_call.1']
    #allocation5 [shape = 'u8[8192]{0}', space=vmem, size = 0x2000, scoped, tag = 'output window, operand 0, single buffered']
    %8 = vsyncpa [#allocation3], 0
    %9 = vsyncpa [#allocation4], 0
    // Predicated region
    $region2: #{tpu_custom_call.1} parent=1 // pred_check
      _
    $region3: #{tpu_custom_call.1} parent=1 // pred_check_branch
      %11 = sbr.rel (0) target = $region5
    $region4: #{tpu_custom_call.1} parent=1 // pred_region
      _
    $region5: #{tpu_custom_call.1} parent=1 // pred_fallthru
      _
    // Predicated region
    $region6: #{tpu_custom_call.1} parent=1 // pred_check
      _
    $region7: #{tpu_custom_call.1} parent=1 // pred_check_branch
      %13 = sbr.rel (0) target = $region9
    $region8: #{tpu_custom_call.1} parent=1 // pred_region
      _
    $region9: #{tpu_custom_call.1} parent=1 // pred_fallthru
      _
    // Predicated region
    $region10: #{tpu_custom_call.1} parent=1 // pred_check
      _
    $region11: #{tpu_custom_call.1} parent=1 // pred_check_branch
      %15 = sbr.rel (0) target = $region13
    $region12: #{tpu_custom_call.1} parent=1 // pred_region
      %s17 = ssub.s32 512, 512
      %18 = vsyncadd [#allocation3], %s17
      %s19 = sshll.u32 [#allocation2], 4
      %s20 = int_to_ptr.vmem [resolvable:$true] %s19
      %25 = dma.hbm_to_vmem [thread:$0]  %s2, 512, %s20, [#allocation3], 128, 128, 8
    $region13: #{tpu_custom_call.1} parent=1 // pred_fallthru
      _
    // Predicated region
    $region14: #{tpu_custom_call.1} parent=1 // pred_check
      _
    $region15: #{tpu_custom_call.1} parent=1 // pred_check_branch
      %27 = sbr.rel (0) target = $region17
    $region16: #{tpu_custom_call.1} parent=1 // pred_region
      %28 = dma.done [#allocation3], 512
    $region17: #{tpu_custom_call.1} parent=1 // pred_fallthru
      _
    %v30 = vld [vmem:[%s0] sm:$0xf]
    %v31 = vld [vmem:[%s0 + $0x4] sm:$0xf]
    %v32 = vld [vmem:[%s0 + $0x8] sm:$0xf]
    %v33 = vld [vmem:[%s0 + $0xc] sm:$0xf]
    %v34 = vld [vmem:[%s1] sm:$0xf]
    %v35 = vld [vmem:[%s1 + $0x4] sm:$0xf]
    %v36 = vld [vmem:[#allocation2] sm:$0xff]
    %v37 = vld [vmem:[#allocation2 + $0x8] sm:$0xff]
    %v38 = vld [vmem:[#allocation2 + $0x10] sm:$0xff]
    %v39 = vld [vmem:[#allocation2 + $0x18] sm:$0xff]
    %v44 = vunpack.c.l.b16 %v30
    %v45 = vunpack.c.l.b16 %v31
    %v46 = vunpack.c.l.b16 %v32
    %v47 = vunpack.c.l.b16 %v33
    %v48 = vpack.c.b16 %v45, %v44
    %v49 = vpack.c.b16 %v47, %v46
    %v52 = vunpack.c.l.b16 %v34
    %v53 = vunpack.c.l.b16 %v35
    %v54 = vpack.c.b16 %v53, %v52
    %vm56 = vcmask 130048
    %v58 = vsel %vm56, %v48, 0
    %v61 = vsel %vm56, %v49, 0
    %63 = vmatprep.subr.bf16.mxu0 0
    %64 = vmatpush1.bf16.msra.mxu0 %v54
    %65 = vmatprep.subr.bf16.mxu0 0
    %66 = vmatpush1.bf16.msra.mxu0 0
    %67 = vmatprep.subr.bf16.mxu0 0
    %68 = vmatpush1.bf16.msra.mxu0 0
    %69 = vmatprep.subr.bf16.mxu0 0
    %70 = vmatpush1.bf16.msra.mxu0 0
    %71 = vmatprep.subr.bf16.mxu0 0
    %72 = vmatpush1.bf16.msra.mxu0 0
    %73 = vmatprep.subr.bf16.mxu0 0
    %74 = vmatpush1.bf16.msra.mxu0 0
    %75 = vmatprep.subr.bf16.mxu0 0
    %76 = vmatpush1.bf16.msra.mxu0 0
    %77 = vmatprep.subr.bf16.mxu0 0
    %78 = vmatpush1.bf16.msra.mxu0 0
    %79 = vmatprep.subr.bf16.mxu0 0
    %80 = vmatpush1.bf16.msra.mxu0 0
    %81 = vmatprep.subr.bf16.mxu0 0
    %82 = vmatpush1.bf16.msra.mxu0 0
    %83 = vmatprep.subr.bf16.mxu0 0
    %84 = vmatpush1.bf16.msra.mxu0 0
    %85 = vmatprep.subr.bf16.mxu0 0
    %86 = vmatpush1.bf16.msra.mxu0 0
    %87 = vmatprep.subr.bf16.mxu0 0
    %88 = vmatpush1.bf16.msra.mxu0 0
    %89 = vmatprep.subr.bf16.mxu0 0
    %90 = vmatpush1.bf16.msra.mxu0 0
    %91 = vmatprep.subr.bf16.mxu0 0
    %92 = vmatpush1.bf16.msra.mxu0 0
    %93 = vmatprep.subr.bf16.mxu0 0
    %94 = vmatpush1.bf16.msra.mxu0 0
    %95 = vmatprep.mubr.bf16.mxu0 0
    %96 = vmatmul.mubr.bf16.gmra.mrb[0].mxu0 %v58
    %v97 = vpop.f32.mrb[0].mxu0
    %v98 = vadd.f32 %v36, %v97
    %v99 = vpop.f32.mrb[0].mxu0
    %v100 = vpop.f32.mrb[0].mxu0
    %v101 = vadd.f32 %v37, %v100
    %v102 = vpop.f32.mrb[0].mxu0
    %103 = vmatprep.mubr.bf16.mxu0 0
    %104 = vmatmul.mubr.bf16.gmra.mrb[0].mxu0 %v61
    %v105 = vpop.f32.mrb[0].mxu0
    %v106 = vadd.f32 %v38, %v105
    %v107 = vpop.f32.mrb[0].mxu0
    %v108 = vpop.f32.mrb[0].mxu0
    %v109 = vadd.f32 %v39, %v108
    %v110 = vpop.f32.mrb[0].mxu0
    %111 = vdwg.mxu0
    %v112 = vpack.c.bf16 %v101, %v98
    %v113 = vpack.c.bf16 %v109, %v106
    %v116 = vunpack.c.l.b16 %v112
    %v117 = vunpack.c.h.b16 %v112
    %v118 = vunpack.c.l.b16 %v113
    %v119 = vunpack.c.h.b16 %v113
    %v120 = vpack.c.b16 %v116, %v116
    %v121 = vpack.c.b16 %v117, %v117
    %v122 = vpack.c.b16 %v118, %v118
    %v123 = vpack.c.b16 %v119, %v119
    %128 = vst [vmem:[#allocation5] sm:$0xf] %v120
    %129 = vst [vmem:[#allocation5 + $0x4] sm:$0xf] %v121
    %130 = vst [vmem:[#allocation5 + $0x8] sm:$0xf] %v122
    %131 = vst [vmem:[#allocation5 + $0xc] sm:$0xf] %v123
    // Predicated region
    $region18: #{tpu_custom_call.1} parent=1 // pred_check
      _
    $region19: #{tpu_custom_call.1} parent=1 // pred_check_branch
      %133 = sbr.rel (0) target = $region21
    $region20: #{tpu_custom_call.1} parent=1 // pred_region
      %s135 = ssub.s32 256, 256
      %136 = vsyncadd [#allocation4], %s135
      %s137 = sshll.u32 [#allocation5], 4
      %s138 = int_to_ptr.vmem [resolvable:$true] %s137
      %143 = dma.vmem_to_hbm [thread:$0]  %s138, 256, %s3, [#allocation4], 64, 64, 4
    $region21: #{tpu_custom_call.1} parent=1 // pred_fallthru
      _
    // Predicated region
    $region22: #{tpu_custom_call.1} parent=1 // pred_check
      _
    $region23: #{tpu_custom_call.1} parent=1 // pred_check_branch
      %145 = sbr.rel (0) target = $region25
    $region24: #{tpu_custom_call.1} parent=1 // pred_region
      %146 = dma.done [#allocation4], 256
    $region25: #{tpu_custom_call.1} parent=1 // pred_fallthru
      _
    %147 = vsyncpa [#allocation3], 1
    %148 = vsyncpa [#allocation4], 1

</llo_original>
